<compile_context>
chip_gen: v7x
topology: tpu7x:2x2x1
jax: 0.10.0
libtpu: 0.0.40
codegen_flags: <defaults>
</compile_context>

<pallas_src>
import functools

import jax
import jax.numpy as jnp
from jax.experimental import pallas as pl
from jax.experimental.pallas import tpu as pltpu

_EPS = 1e-5


# ----------------------------- kernels -------------------------------------
def _rc_single_block_kernel(x_ref, gamma_ref, beta_ref, o_ref, *, n_elems):
    """Whole (L, D) array in one VMEM block (single-HBM-read fast path)."""
    x = x_ref[...].astype(jnp.float32)                       # f32 math even for bf16 input
    mean = jnp.mean(x, axis=-1, keepdims=True)               # per-row mean (lane reduce)
    diff = x - mean
    row_ssq = jnp.sum(diff * diff, axis=-1, keepdims=True)   # (L, 1) lane reduce (XLU)
    var = jnp.sum(row_ssq) * (1.0 / n_elems)                 # GLOBAL variance
    inv_std = jax.lax.rsqrt(var + _EPS)                      # single EUP rsqrt
    out = gamma_ref[...] * (diff * inv_std) + beta_ref[...]  # affine in f32
    o_ref[...] = out.astype(o_ref.dtype)


def _rc_stats_kernel(x_ref, partial_ref, *, row_tile, n_rows, mask_tail):
    """Pass 1: per-tile partial sum of (x - row_mean)^2.

    Each grid step writes its own output block -> fully parallel (megacore OK).
    The ragged tail tile (L % row_tile != 0) is masked: Pallas leaves the
    out-of-bounds part of the input block undefined.
    """
    x = x_ref[...].astype(jnp.float32)
    if mask_tail:
        row_ids = (pl.program_id(0) * row_tile
                   + jax.lax.broadcasted_iota(jnp.int32, x.shape, 0))
        x = jnp.where(row_ids < n_rows, x, 0.0)   # zero rows => mean 0, diff 0
    mean = jnp.mean(x, axis=-1, keepdims=True)
    diff = x - mean
    row_ssq = jnp.sum(diff * diff, axis=-1, keepdims=True)   # (TL, 1) lane reduce
    partial_ref[...] = jnp.full(partial_ref.shape, jnp.sum(row_ssq),
                                dtype=jnp.float32)


def _rc_normalize_kernel(inv_std_ref, x_ref, gamma_ref, beta_ref, o_ref):
    """Pass 2: re-stream rows, apply gamma * ((x - row_mean) * inv_std) + beta.

    inv_std is an SMEM scalar computed once in XLA between the passes.
    Ragged-tail garbage rows are per-row only and never written back.
    """
    x = x_ref[...].astype(jnp.float32)
    mean = jnp.mean(x, axis=-1, keepdims=True)
    diff = x - mean
    inv_std = inv_std_ref[0]                                  # SMEM scalar read
    out = gamma_ref[...] * (diff * inv_std) + beta_ref[...]
    o_ref[...] = out.astype(o_ref.dtype)


# ----------------------------- helpers --------------------------------------
def _round_up(a, b):
    return (a + b - 1) // b * b


def _vmem_limit_bytes():
    """Generation-aware scoped-VMEM limit: ~3/4 of physical VMEM.

    v5e/v6e: 128 MiB physical -> ~96 MiB limit; v7x: 64 MiB -> ~48 MiB.
    Falls back to the conservative 48 MiB (safe on all generations).
    """
    phys = 64 << 20
    try:
        info = pltpu.get_tpu_info()
        for name in ("vmem_capacity_bytes", "vmem_size_bytes", "vmem_bytes"):
            v = getattr(info, name, None)
            if v:
                phys = int(v)
                break
    except Exception:
        pass
    return (phys * 3) // 4


# ----------------------------- wrapper --------------------------------------
def residual_connection(x, gamma, beta, *, row_tile=None, force_tiled=False):
    """x: [L, D]; gamma, beta: [D].  Returns array with x's dtype."""
    L, D = x.shape
    gamma2d = gamma.reshape(1, D).astype(jnp.float32)        # affine stays f32
    beta2d = beta.reshape(1, D).astype(jnp.float32)
    n_elems = float(L) * float(D)

    vmem_limit = _vmem_limit_bytes()
    f32_bytes = L * D * 4                                    # f32 working-set unit

    # ---- fast path: one block, one pass, x read from HBM exactly once -------
    # Budget factor 8 covers in/out (double) buffers plus f32 temporaries.
    if (not force_tiled) and (f32_bytes * 8 <= vmem_limit):
        kernel = functools.partial(_rc_single_block_kernel, n_elems=n_elems)
        return pl.pallas_call(
            kernel,
            out_shape=jax.ShapeDtypeStruct((L, D), x.dtype),
            in_specs=[
                pl.BlockSpec((L, D), lambda: (0, 0)),        # full-array block
                pl.BlockSpec((1, D), lambda: (0, 0)),
                pl.BlockSpec((1, D), lambda: (0, 0)),
            ],
            out_specs=pl.BlockSpec((L, D), lambda: (0, 0)),
            compiler_params=pltpu.CompilerParams(vmem_limit_bytes=vmem_limit),
        )(x, gamma2d, beta2d)

    # ---- tiled two-pass path (global variance couples all rows) -------------
    if row_tile is None:
        # ~8 MiB blocks on v5e/v6e (96 MiB limit), ~4 MiB on v7x (48 MiB limit)
        target = (8 << 20) if vmem_limit >= (80 << 20) else (4 << 20)
        row_tile = max(8, min(2048, target // (D * 4)))
    row_tile = min(int(row_tile), _round_up(L, 8))
    row_tile = max(8, (row_tile // 8) * 8)
    n_tiles = (L + row_tile - 1) // row_tile                 # cdiv: no pad, no slice
    mask_tail = (L % row_tile) != 0

    # Pass 1: per-tile partial sums of squared centered values ("parallel"
    # grid axis -> both v7x TensorCores read HBM; no resident accumulator).
    stats_kernel = functools.partial(
        _rc_stats_kernel, row_tile=row_tile, n_rows=L, mask_tail=mask_tail)
    partials = pl.pallas_call(
        stats_kernel,
        out_shape=jax.ShapeDtypeStruct((n_tiles, 8, 128), jnp.float32),
        grid=(n_tiles,),
        in_specs=[pl.BlockSpec((row_tile, D), lambda i: (i, 0))],
        out_specs=pl.BlockSpec((1, 8, 128), lambda i: (i, 0, 0)),
        compiler_params=pltpu.CompilerParams(
            dimension_semantics=("parallel",),
            vmem_limit_bytes=vmem_limit),
    )(x)

    # Tiny reduction + single rsqrt in XLA between the passes.
    ssq = jnp.sum(partials[:, 0, 0])
    inv_std = jax.lax.rsqrt(ssq * (1.0 / n_elems) + _EPS).reshape(1)
    inv_std = inv_std.astype(jnp.float32)

    # Pass 2: normalize + affine; "parallel" row axis -> v7x megacore sharding.
    out = pl.pallas_call(
        _rc_normalize_kernel,
        out_shape=jax.ShapeDtypeStruct((L, D), x.dtype),
        grid=(n_tiles,),
        in_specs=[
            pl.BlockSpec(memory_space=pltpu.MemorySpace.SMEM),   # inv_std scalar
            pl.BlockSpec((row_tile, D), lambda i: (i, 0)),
            pl.BlockSpec((1, D), lambda i: (0, 0)),
            pl.BlockSpec((1, D), lambda i: (0, 0)),
        ],
        out_specs=pl.BlockSpec((row_tile, D), lambda i: (i, 0)),
        compiler_params=pltpu.CompilerParams(
            dimension_semantics=("parallel",),
            vmem_limit_bytes=vmem_limit),
    )(inv_std, x, gamma2d, beta2d)
    return out


# ----------------------------- reference ------------------------------------
def residual_connection_ref(x, gamma, beta):
    xf = x.astype(jnp.float32)
    mean = jnp.mean(xf, axis=-1, keepdims=True)
    var = jnp.mean(jnp.square(xf - mean))        # GLOBAL variance (matches module)
    std = jnp.sqrt(var + _EPS)
    norm = (xf - mean) / std
    return gamma[None, :].astype(jnp.float32) * norm + beta[None, :].astype(jnp.float32)


# ----------------------------- test -----------------------------------------
if __name__ == "__main__":
    key = jax.random.PRNGKey(0)
    k0, k1, k2, k3 = jax.random.split(key, 4)

    # 1) Toy decoder shape (single-block fast path), f32.
    L0, D0 = 8, 32
    x0 = jax.random.normal(k0, (L0, D0), dtype=jnp.float32)
    gamma0 = jnp.ones((D0,), dtype=jnp.float32)     # matches nn.Module-style init
    beta0 = jnp.zeros((D0,), dtype=jnp.float32)
    out0 = jax.block_until_ready(residual_connection(x0, gamma0, beta0))
    ref0 = residual_connection_ref(x0, gamma0, beta0)
    assert out0.shape == (L0, D0)
    assert jnp.allclose(out0, ref0, atol=1e-5, rtol=1e-5), "small-path mismatch"

    # 2) Tiled two-pass path (forced), f32, L not a multiple of the tile
    #    (exercises the ragged-tail masking; no pad / no output slice).
    L1, D1 = 200, 256
    x1 = jax.random.normal(k1, (L1, D1), dtype=jnp.float32)
    gamma1 = jax.random.normal(k2, (D1,), dtype=jnp.float32)
    beta1 = jax.random.normal(k3, (D1,), dtype=jnp.float32)
    out1 = jax.block_until_ready(
        residual_connection(x1, gamma1, beta1, force_tiled=True, row_tile=64))
    ref1 = residual_connection_ref(x1, gamma1, beta1)
    assert out1.shape == (L1, D1)
    assert jnp.allclose(out1, ref1, atol=1e-4, rtol=1e-4), "tiled-path mismatch"

    # 3) bf16 streaming through the tiled path (f32 accumulation/affine inside).
    x2 = x1.astype(jnp.bfloat16)
    out2 = jax.block_until_ready(
        residual_connection(x2, gamma1, beta1, force_tiled=True, row_tile=64))
    ref2 = residual_connection_ref(x2, gamma1, beta1)
    assert out2.dtype == jnp.bfloat16
    assert jnp.allclose(out2.astype(jnp.float32), ref2, atol=5e-2, rtol=5e-2), \
        "bf16 tiled-path mismatch"

    print("KERNEL_OK")
</pallas_src>

<mosaic_0001>
module attributes {stable_mosaic.version = 11 : i64} {
  func.func @_rc_single_block_kernel(%arg0: memref<8x32xf32, #tpu.memory_space<vmem>>, %arg1: memref<1x32xf32, #tpu.memory_space<vmem>>, %arg2: memref<1x32xf32, #tpu.memory_space<vmem>>, %arg3: memref<8x32xf32, #tpu.memory_space<vmem>>) attributes {dimension_semantics = [], scalar_prefetch = 0 : i64, scratch_operands = 0 : i64, tpu.core_type = #tpu.core_type<tc>} {
    %c0 = arith.constant 0 : index
    %c0_0 = arith.constant 0 : index
    %0 = vector.load %arg0[%c0, %c0_0] : memref<8x32xf32, #tpu.memory_space<vmem>>, vector<8x32xf32>
    %cst = arith.constant dense<0.000000e+00> : vector<8xf32>
    %1 = vector.multi_reduction <add>, %0, %cst [1] : vector<8x32xf32> to vector<8xf32>
    %2 = vector.shape_cast %1 : vector<8xf32> to vector<8x1xf32>
    %cst_1 = arith.constant 3.200000e+01 : f32
    %3 = vector.broadcast %cst_1 : f32 to vector<8x1xf32>
    %4 = arith.divf %2, %3 : vector<8x1xf32>
    %5 = vector.broadcast %4 : vector<8x1xf32> to vector<8x32xf32>
    %6 = arith.subf %0, %5 : vector<8x32xf32>
    %7 = arith.mulf %6, %6 : vector<8x32xf32>
    %cst_2 = arith.constant dense<0.000000e+00> : vector<8xf32>
    %8 = vector.multi_reduction <add>, %7, %cst_2 [1] : vector<8x32xf32> to vector<8xf32>
    %9 = vector.shape_cast %8 : vector<8xf32> to vector<8x1xf32>
    %10 = vector.shape_cast %9 : vector<8x1xf32> to vector<1x8x1xf32>
    %cst_3 = arith.constant dense<0.000000e+00> : vector<1xf32>
    %11 = vector.multi_reduction <add>, %10, %cst_3 [1, 2] : vector<1x8x1xf32> to vector<1xf32>
    %12 = vector.shape_cast %11 : vector<1xf32> to vector<1x1x1xf32>
    %13 = vector.extract %12[0, 0, 0] : f32 from vector<1x1x1xf32>
    %cst_4 = arith.constant 3.906250e-03 : f32
    %14 = arith.mulf %13, %cst_4 : f32
    %cst_5 = arith.constant 9.99999974E-6 : f32
    %15 = arith.addf %14, %cst_5 : f32
    %16 = math.rsqrt %15 : f32
    %c0_6 = arith.constant 0 : index
    %c0_7 = arith.constant 0 : index
    %17 = vector.load %arg1[%c0_6, %c0_7] : memref<1x32xf32, #tpu.memory_space<vmem>>, vector<1x32xf32>
    %18 = vector.broadcast %16 : f32 to vector<8x32xf32>
    %19 = arith.mulf %6, %18 : vector<8x32xf32>
    %20 = vector.broadcast %17 : vector<1x32xf32> to vector<8x32xf32>
    %21 = arith.mulf %20, %19 : vector<8x32xf32>
    %c0_8 = arith.constant 0 : index
    %c0_9 = arith.constant 0 : index
    %22 = vector.load %arg2[%c0_8, %c0_9] : memref<1x32xf32, #tpu.memory_space<vmem>>, vector<1x32xf32>
    %23 = vector.broadcast %22 : vector<1x32xf32> to vector<8x32xf32>
    %24 = arith.addf %21, %23 : vector<8x32xf32>
    %c0_10 = arith.constant 0 : index
    %c0_11 = arith.constant 0 : index
    %25 = vector.load %arg3[%c0_10, %c0_11] : memref<8x32xf32, #tpu.memory_space<vmem>>, vector<8x32xf32>
    tpu.vector_store %arg3[%c0_10, %c0_11], %24 {strides = array<i32>} : memref<8x32xf32, #tpu.memory_space<vmem>>, vector<8x32xf32>,
    return
  }
}

</mosaic_0001>

<llo_original>
// kernel: tpu_custom_call.1
$region0: #{tpu_custom_call.1}
  #allocation0 [shape = 'u32[]', space=smem, size = 0x4, offset = 0x4, fixed_abs, tag = 'smem constant byte address 0x4 - core index']
  #allocation1 [shape = 'u32[144,128]{1,0:T(1,128)}', space=vmem, size = 0x12000, scoped, tag = 'internal scratch']
  %s0 = inlined_call_operand.hbm [shape: f32[8,32], index: 0, kind: input, shape index: {}]
  %s1 = inlined_call_operand.vmem [shape: f32[1,32], index: 1, kind: input, shape index: {}]
  %s2 = inlined_call_operand.vmem [shape: f32[1,32], index: 2, kind: input, shape index: {}]
  %s3 = inlined_call_operand.hbm [shape: f32[8,32], index: 3, kind: output, shape index: {}]
  %s4 = sld [smem:[#allocation0]]
  $region26: #{tpu_custom_call.1} parent=0
    _
  %s6 = ssub.s32 1, %s4
  %s7 = scalar_select 0, %s6, %s4
  $region1: #{tpu_custom_call.1} parent=0
    #allocation2 [shape = 'u8[4096]{0}', space=vmem, size = 0x1000, scoped, tag = 'input window, operand 0, single buffered']
    #allocation3 [shape = 's32[1]{0}', space=sflag, size = 0x4, scoped, tag = 'scoped memory for tpu_custom_call.1']
    #allocation4 [shape = 's32[1]{0}', space=sflag, size = 0x4, scoped, tag = 'scoped memory for tpu_custom_call.1']
    #allocation5 [shape = 'u8[4096]{0}', space=vmem, size = 0x1000, scoped, tag = 'output window, operand 0, single buffered']
    %8 = vsyncpa [#allocation3], 0
    %9 = vsyncpa [#allocation4], 0
    // Predicated region
    $region2: #{tpu_custom_call.1} parent=1 // pred_check
      _
    $region3: #{tpu_custom_call.1} parent=1 // pred_check_branch
      %11 = sbr.rel (0) target = $region5
    $region4: #{tpu_custom_call.1} parent=1 // pred_region
      %s13 = ssub.s32 128, 128
      %14 = vsyncadd [#allocation3], %s13
      %s16 = sshll.u32 [#allocation2], 4
      %s17 = int_to_ptr.vmem [resolvable:$true] %s16
      %19 = dma.hbm_to_vmem [thread:$0]  %s0, 128, %s17, [#allocation3]
    $region5: #{tpu_custom_call.1} parent=1 // pred_fallthru
      _
    // Predicated region
    $region6: #{tpu_custom_call.1} parent=1 // pred_check
      _
    $region7: #{tpu_custom_call.1} parent=1 // pred_check_branch
      %21 = sbr.rel (0) target = $region9
    $region8: #{tpu_custom_call.1} parent=1 // pred_region
      _
    $region9: #{tpu_custom_call.1} parent=1 // pred_fallthru
      _
    // Predicated region
    $region10: #{tpu_custom_call.1} parent=1 // pred_check
      _
    $region11: #{tpu_custom_call.1} parent=1 // pred_check_branch
      %23 = sbr.rel (0) target = $region13
    $region12: #{tpu_custom_call.1} parent=1 // pred_region
      _
    $region13: #{tpu_custom_call.1} parent=1 // pred_fallthru
      _
    // Predicated region
    $region14: #{tpu_custom_call.1} parent=1 // pred_check
      _
    $region15: #{tpu_custom_call.1} parent=1 // pred_check_branch
      %25 = sbr.rel (0) target = $region17
    $region16: #{tpu_custom_call.1} parent=1 // pred_region
      %26 = dma.done [#allocation3], 128
    $region17: #{tpu_custom_call.1} parent=1 // pred_fallthru
      _
    %v27 = vld [vmem:[#allocation2] sm:$0xff]
    %vm28 = vcmask 261120
    %v29 = vsel %vm28, %v27, 0.0
    %30 = vadd.xlane.f32.xlu0 %v29
    %v31 = vpop.xlane.xlu0 %30
    %v32 = vrcp.pop 32.0
    %v33 = vmul.f32 %v31, %v32
    %v34 = vsub.f32 %v27, %v33
    %v35 = vmul.f32 %v34, %v34
    %v36 = vsel %vm28, %v35, 0.0
    %37 = vadd.xlane.f32.xlu0 %v36
    %v38 = vpop.xlane.xlu0 %37
    %vm39 = vcmask 7168
    %v40 = vsel %vm39, %v38, 0.0
    %41 = vadd.xlane.f32.xlu0 %v40
    %v42 = vpop.xlane.xlu0 %41
    %v43 = vrot.slane %v42, 4
    %v44 = vadd.f32 %v42, %v43
    %v45 = vrot.slane %v44, 2
    %v46 = vadd.f32 %v44, %v45
    %v47 = vrot.slane %v46, 1
    %v48 = vadd.f32 %v46, %v47
    %s49 = vtos %v48
    %s50 = smul.f32 %s49, 0.00390625
    %s51 = sadd.f32 %s50, 1e-05
    %v52 = vstv %s51
    %v53 = vrsqrt.pop %v52
    %s54 = vtos %v53
    %v55 = vld [vmem:[%s1] sm:$0x1]
    %v56 = vstv %s54
    %v57 = vmul.f32 %v34, %v56
    %v59 = vlaneseq
    %v60 = vshrl.u32 %v59, 7
    %v61 = vsub.s32 0, %v60
    %v62 = vrot.slane %v55, %v61
    %v64 = vmul.f32 %v62, %v57
    %v65 = vld [vmem:[%s2] sm:$0x1]
    %v67 = vlaneseq
    %v68 = vshrl.u32 %v67, 7
    %v69 = vsub.s32 0, %v68
    %v70 = vrot.slane %v65, %v69
    %v72 = vadd.f32 %v64, %v70
    %73 = vst.msk [vmem:[#allocation5] sm:$0xff] %vm28, %v72
    // Predicated region
    $region18: #{tpu_custom_call.1} parent=1 // pred_check
      _
    $region19: #{tpu_custom_call.1} parent=1 // pred_check_branch
      %75 = sbr.rel (0) target = $region21
    $region20: #{tpu_custom_call.1} parent=1 // pred_region
      %s77 = ssub.s32 128, 128
      %78 = vsyncadd [#allocation4], %s77
      %s80 = sshll.u32 [#allocation5], 4
      %s81 = int_to_ptr.vmem [resolvable:$true] %s80
      %83 = dma.vmem_to_hbm [thread:$0]  %s81, 128, %s3, [#allocation4]
    $region21: #{tpu_custom_call.1} parent=1 // pred_fallthru
      _
    // Predicated region
    $region22: #{tpu_custom_call.1} parent=1 // pred_check
      _
    $region23: #{tpu_custom_call.1} parent=1 // pred_check_branch
      %85 = sbr.rel (0) target = $region25
    $region24: #{tpu_custom_call.1} parent=1 // pred_region
      %86 = dma.done [#allocation4], 128
    $region25: #{tpu_custom_call.1} parent=1 // pred_fallthru
      _
    %87 = vsyncpa [#allocation3], 1
    %88 = vsyncpa [#allocation4], 1

</llo_original>
